<compile_context>
chip_gen: v5e
topology: v5e:2x2
jax: 0.10.0
libtpu: 0.0.40
codegen_flags: <defaults>
</compile_context>

<pallas_src>
import jax
import jax.numpy as jnp
from jax.experimental import pallas as pl
from jax.experimental.pallas import tpu as pltpu

_SUBLANE = 8  # f32 sublane granularity (second-to-last dim of a block)


def _cdiv(a, b):
    return -(-a // b)


def _round_up(x, m):
    return _cdiv(x, m) * m


def _vmem_capacity_bytes():
    """Physical VMEM per TensorCore (128 MiB v5e/v6e, 64 MiB v7x)."""
    try:
        return int(pltpu.get_tpu_info().vmem_capacity_bytes)
    except Exception:
        return 64 << 20  # conservative fallback (v7x per-TC VMEM)


def net_tanh_kernel(x_ref, w1_ref, b1_ref, w2_ref, b2_ref, o_ref):
    w1 = w1_ref[...]                 # (n_in, H)  — resident, caller-chosen dtype
    w2 = w2_ref[...]                 # (H, n_out) — resident, caller-chosen dtype
    b1 = b1_ref[...]                 # (1, H)   f32
    b2 = b2_ref[...]                 # (1, O)   f32

    # hidden = tanh(x @ W1 + b1): MXU in the weights' dtype (bf16 fast path if
    # bf16 weights were passed), f32 accumulation, f32 element-wise math.
    h = jnp.dot(x_ref[...].astype(w1.dtype), w1,
                preferred_element_type=jnp.float32)
    h = jnp.tanh(h + b1)

    # out = hidden @ W2 + b2
    y = jnp.dot(h.astype(w2.dtype), w2, preferred_element_type=jnp.float32)
    o_ref[...] = (y + b2).astype(o_ref.dtype)


def net_tanh_forward(x, w1, b1, w2, b2, *, batch_tile=1024,
                     vmem_budget_bytes=None):
    """Forward pass of Net_tanh.

    x:  (B, n_input)
    w1: (n_input, n_hidden)   (PyTorch weight transposed to (in, out))
    b1: (n_hidden,)
    w2: (n_hidden, n_output)
    b2: (n_output,)
    Returns (B, n_output) = tanh(x @ w1 + b1) @ w2 + b2.

    Pass bf16 w1/w2 for the bf16 MXU path (accumulation stays f32).
    """
    B, n_in = x.shape
    assert w1.shape[0] == n_in
    n_hidden = w1.shape[1]
    assert w2.shape[0] == n_hidden
    n_out = w2.shape[1]
    out_dtype = x.dtype

    # Biases as (1, N) f32 rows (element-wise math stays f32; v5e-safe).
    b1_2d = b1.astype(jnp.float32).reshape(1, n_hidden)
    b2_2d = b2.astype(jnp.float32).reshape(1, n_out)

    isz = lambda a: jnp.dtype(a.dtype).itemsize
    # VMEM bookkeeping: the default pipeline double-buffers every operand.
    resident_bytes = 2 * (w1.size * isz(w1) + w2.size * isz(w2)
                          + b1_2d.size * 4 + b2_2d.size * 4)
    per_row_bytes = n_in * isz(x) + n_out * jnp.dtype(out_dtype).itemsize

    vmem_cap = _vmem_capacity_bytes()
    if vmem_budget_bytes is None:
        # ~64 MiB on the 128 MiB parts (v5e/v6e), ~32 MiB on v7x.
        vmem_budget_bytes = vmem_cap // 2

    # --- batch tiling -------------------------------------------------------
    # >=2 grid steps whenever the batch allows (so the "parallel" axis feeds
    # both v7x TensorCores); tile ~= cdiv(B, n_steps) rounded to 8 to minimize
    # dead-row tail padding; shrink further only if VMEM budget demands it.
    n_steps = _cdiv(B, batch_tile)
    if n_steps == 1 and B >= 2 * _SUBLANE:
        n_steps = 2
    tb = _round_up(_cdiv(B, n_steps), _SUBLANE)
    while tb > _SUBLANE and resident_bytes + 2 * tb * per_row_bytes > vmem_budget_bytes:
        n_steps += 1
        tb = _round_up(_cdiv(B, n_steps), _SUBLANE)
    # TODO(synk): if resident_bytes alone still exceeds the budget (very large
    # hidden layers), add a K-tiling grid axis with a VMEM f32 accumulator
    # (pl.when init/finalize) instead of keeping both weights fully resident.

    B_p = n_steps * tb
    x_p = x if B_p == B else jnp.pad(x, ((0, B_p - B), (0, 0)))

    required = resident_bytes + 2 * tb * per_row_bytes
    vmem_limit = int(min(max(required + (4 << 20), 32 << 20),
                         vmem_cap - (8 << 20)))

    # Real (unpadded) work for the XLA scheduler.
    flops = 2 * B * (n_in * n_hidden + n_hidden * n_out)
    bytes_accessed = (x.size * isz(x) + w1.size * isz(w1) + w2.size * isz(w2)
                      + (n_hidden + n_out) * 4
                      + B * n_out * jnp.dtype(out_dtype).itemsize)

    y_p = pl.pallas_call(
        net_tanh_kernel,
        out_shape=jax.ShapeDtypeStruct((B_p, n_out), out_dtype),
        grid=(n_steps,),
        in_specs=[
            pl.BlockSpec((tb, n_in), lambda i: (i, 0)),         # x tile: pipelined
            pl.BlockSpec((n_in, n_hidden), lambda i: (0, 0)),   # W1: resident
            pl.BlockSpec((1, n_hidden), lambda i: (0, 0)),      # b1: resident
            pl.BlockSpec((n_hidden, n_out), lambda i: (0, 0)),  # W2: resident
            pl.BlockSpec((1, n_out), lambda i: (0, 0)),         # b2: resident
        ],
        out_specs=pl.BlockSpec((tb, n_out), lambda i: (i, 0)),
        compiler_params=pltpu.CompilerParams(
            dimension_semantics=("parallel",),   # megacore-shard batch (v7x)
            vmem_limit_bytes=vmem_limit,
        ),
        cost_estimate=pl.CostEstimate(
            flops=flops,
            transcendentals=B * n_hidden,
            bytes_accessed=bytes_accessed,
        ),
    )(x_p, w1, b1_2d, w2, b2_2d)

    return y_p if B_p == B else y_p[:B]


def init_linear_params(key, in_features, out_features, dtype=jnp.float32):
    """Mimic torch.nn.Linear default init: U(-1/sqrt(fan_in), 1/sqrt(fan_in))."""
    kw, kb = jax.random.split(key)
    bound = 1.0 / jnp.sqrt(jnp.asarray(in_features, dtype))
    # PyTorch stores weight as (out, in); keep that layout, transpose for kernel.
    w = jax.random.uniform(kw, (out_features, in_features), dtype,
                           minval=-bound, maxval=bound)
    b = jax.random.uniform(kb, (out_features,), dtype,
                           minval=-bound, maxval=bound)
    return w, b


if __name__ == "__main__":
    n_input, n_hidden, n_output = 16, 32, 8
    batch = 8

    key = jax.random.PRNGKey(0)
    k_x, k_h, k_o = jax.random.split(key, 3)

    x = jax.random.normal(k_x, (batch, n_input), jnp.float32)
    w_hidden, b_hidden = init_linear_params(k_h, n_input, n_hidden)
    w_output, b_output = init_linear_params(k_o, n_hidden, n_output)

    # Kernel consumes weights as (in, out): transpose the PyTorch-layout weights.
    w1 = w_hidden.T
    w2 = w_output.T

    # Pure-JAX reference of y = tanh(x @ W1.T + b1) @ W2.T + b2
    y_ref = jnp.tanh(x @ w_hidden.T + b_hidden) @ w_output.T + b_output

    # 1) Exact f32 path (matches PyTorch semantics).
    y = net_tanh_forward(x, w1, b_hidden, w2, b_output)
    y = jax.block_until_ready(y)
    assert y.shape == (batch, n_output)
    assert jnp.allclose(y, y_ref, atol=1e-5, rtol=1e-5)

    # 2) Grid > 1, non-divisible batch, minimal tail padding.
    k_x2 = jax.random.fold_in(key, 7)
    x2 = jax.random.normal(k_x2, (260, n_input), jnp.float32)
    y2 = net_tanh_forward(x2, w1, b_hidden, w2, b_output, batch_tile=64)
    y2 = jax.block_until_ready(y2)
    y2_ref = jnp.tanh(x2 @ w_hidden.T + b_hidden) @ w_output.T + b_output
    assert y2.shape == (260, n_output)
    assert jnp.allclose(y2, y2_ref, atol=1e-5, rtol=1e-5)

    # 3) bf16 MXU fast path (weights in bf16, f32 accumulation / element-wise).
    y_bf16 = net_tanh_forward(x, w1.astype(jnp.bfloat16), b_hidden,
                              w2.astype(jnp.bfloat16), b_output)
    y_bf16 = jax.block_until_ready(y_bf16)
    assert y_bf16.shape == (batch, n_output)
    assert jnp.allclose(y_bf16, y_ref, atol=5e-2, rtol=5e-2)

    print("KERNEL_OK")
</pallas_src>

<mosaic_0001>
module attributes {stable_mosaic.version = 11 : i64} {
  func.func @net_tanh_kernel(%arg0: i32, %arg1: memref<8x16xf32, #tpu.memory_space<vmem>>, %arg2: memref<16x32xf32, #tpu.memory_space<vmem>>, %arg3: memref<1x32xf32, #tpu.memory_space<vmem>>, %arg4: memref<32x8xf32, #tpu.memory_space<vmem>>, %arg5: memref<1x8xf32, #tpu.memory_space<vmem>>, %arg6: memref<8x8xf32, #tpu.memory_space<vmem>>) attributes {dimension_semantics = [#tpu.dimension_semantics<parallel>], iteration_bounds = array<i64: 1>, scalar_prefetch = 0 : i64, scratch_operands = 0 : i64, tpu.core_type = #tpu.core_type<tc>, window_params = [{transform_indices = @transform_0, window_bounds = array<i64: 8, 16>}, {pipeline_mode = #tpu.pipeline_mode<synchronous>, transform_indices = @transform_1, window_bounds = array<i64: 16, 32>}, {pipeline_mode = #tpu.pipeline_mode<synchronous>, transform_indices = @transform_2, window_bounds = array<i64: 1, 32>}, {pipeline_mode = #tpu.pipeline_mode<synchronous>, transform_indices = @transform_3, window_bounds = array<i64: 32, 8>}, {pipeline_mode = #tpu.pipeline_mode<synchronous>, transform_indices = @transform_4, window_bounds = array<i64: 1, 8>}, {transform_indices = @transform_5, window_bounds = array<i64: 8, 8>}]} {
    %c0 = arith.constant 0 : index
    %c0_0 = arith.constant 0 : index
    %0 = vector.load %arg2[%c0, %c0_0] : memref<16x32xf32, #tpu.memory_space<vmem>>, vector<16x32xf32>
    %c0_1 = arith.constant 0 : index
    %c0_2 = arith.constant 0 : index
    %1 = vector.load %arg4[%c0_1, %c0_2] : memref<32x8xf32, #tpu.memory_space<vmem>>, vector<32x8xf32>
    %c0_3 = arith.constant 0 : index
    %c0_4 = arith.constant 0 : index
    %2 = vector.load %arg3[%c0_3, %c0_4] : memref<1x32xf32, #tpu.memory_space<vmem>>, vector<1x32xf32>
    %c0_5 = arith.constant 0 : index
    %c0_6 = arith.constant 0 : index
    %3 = vector.load %arg5[%c0_5, %c0_6] : memref<1x8xf32, #tpu.memory_space<vmem>>, vector<1x8xf32>
    %c0_7 = arith.constant 0 : index
    %c0_8 = arith.constant 0 : index
    %4 = vector.load %arg1[%c0_7, %c0_8] : memref<8x16xf32, #tpu.memory_space<vmem>>, vector<8x16xf32>
    %cst = arith.constant dense<0.000000e+00> : vector<8x32xf32>
    %5 = tpu.matmul %4, %0, %cst {dimension_numbers = #tpu.dot_dimension_numbers<[1], [0], [0], [1], [0, 0, 1, 1], [], []>} : vector<8x16xf32>, vector<16x32xf32>, vector<8x32xf32> -> vector<8x32xf32>
    %6 = vector.broadcast %2 : vector<1x32xf32> to vector<8x32xf32>
    %7 = arith.addf %5, %6 : vector<8x32xf32>
    %8 = math.tanh %7 : vector<8x32xf32>
    %cst_9 = arith.constant dense<0.000000e+00> : vector<8x8xf32>
    %9 = tpu.matmul %8, %1, %cst_9 {dimension_numbers = #tpu.dot_dimension_numbers<[1], [0], [0], [1], [0, 0, 1, 1], [], []>} : vector<8x32xf32>, vector<32x8xf32>, vector<8x8xf32> -> vector<8x8xf32>
    %10 = vector.broadcast %3 : vector<1x8xf32> to vector<8x8xf32>
    %11 = arith.addf %9, %10 : vector<8x8xf32>
    %c0_10 = arith.constant 0 : index
    %c0_11 = arith.constant 0 : index
    %12 = vector.load %arg6[%c0_10, %c0_11] : memref<8x8xf32, #tpu.memory_space<vmem>>, vector<8x8xf32>
    tpu.vector_store %arg6[%c0_10, %c0_11], %11 {strides = array<i32>} : memref<8x8xf32, #tpu.memory_space<vmem>>, vector<8x8xf32>,
    return
  }
  func.func @transform_0(%arg0: i32) -> (i32, i32) {
    %c0_i32 = arith.constant 0 : i32
    %c0_i32_0 = arith.constant 0 : i32
    return %arg0, %c0_i32 : i32, i32
  }
  func.func @transform_1(%arg0: i32) -> (i32, i32) {
    %c0_i32 = arith.constant 0 : i32
    %c0_i32_0 = arith.constant 0 : i32
    %c0_i32_1 = arith.constant 0 : i32
    return %c0_i32, %c0_i32_0 : i32, i32
  }
  func.func @transform_2(%arg0: i32) -> (i32, i32) {
    %c0_i32 = arith.constant 0 : i32
    %c0_i32_0 = arith.constant 0 : i32
    %c0_i32_1 = arith.constant 0 : i32
    return %c0_i32, %c0_i32_0 : i32, i32
  }
  func.func @transform_3(%arg0: i32) -> (i32, i32) {
    %c0_i32 = arith.constant 0 : i32
    %c0_i32_0 = arith.constant 0 : i32
    %c0_i32_1 = arith.constant 0 : i32
    return %c0_i32, %c0_i32_0 : i32, i32
  }
  func.func @transform_4(%arg0: i32) -> (i32, i32) {
    %c0_i32 = arith.constant 0 : i32
    %c0_i32_0 = arith.constant 0 : i32
    %c0_i32_1 = arith.constant 0 : i32
    return %c0_i32, %c0_i32_0 : i32, i32
  }
  func.func @transform_5(%arg0: i32) -> (i32, i32) {
    %c0_i32 = arith.constant 0 : i32
    %c0_i32_0 = arith.constant 0 : i32
    return %arg0, %c0_i32 : i32, i32
  }
}

</mosaic_0001>

<llo_original>
// kernel: tpu_custom_call.1
$region0: #{tpu_custom_call.1}
  #allocation0 [shape = 'u32[]', space=smem, size = 0x4, offset = 0x4, fixed_abs, tag = 'smem constant byte address 0x4 - core index']
  #allocation1 [shape = 'u32[72,128]{1,0:T(1,128)}', space=vmem, size = 0x9000, scoped, tag = 'internal scratch']
  %s0 = inlined_call_operand.vmem [shape: f32[8,16], index: 0, kind: input, shape index: {}]
  %s1 = inlined_call_operand.vmem [shape: f32[16,32], index: 1, kind: input, shape index: {}]
  %s2 = inlined_call_operand.vmem [shape: f32[1,32], index: 2, kind: input, shape index: {}]
  %s3 = inlined_call_operand.vmem [shape: f32[32,8], index: 3, kind: input, shape index: {}]
  %s4 = inlined_call_operand.vmem [shape: f32[1,8], index: 4, kind: input, shape index: {}]
  %s5 = inlined_call_operand.hbm [shape: f32[8,8], index: 5, kind: output, shape index: {}]
  %s6 = sld [smem:[#allocation0]]
  $region30: #{tpu_custom_call.1} parent=0
    _
  %s8 = ssub.s32 1, %s6
  %s9 = scalar_select 0, %s8, %s6
  $region1: #{tpu_custom_call.1} parent=0
    #allocation2 [shape = 'u8[4096]{0}', space=vmem, size = 0x1000, scoped, tag = 'output window, operand 0, single buffered']
    #allocation3 [shape = 's32[1]{0}', space=sflag, size = 0x4, scoped, tag = 'scoped memory for tpu_custom_call.1']
    %10 = vsyncpa [#allocation3], 0
    // Predicated region
    $region2: #{tpu_custom_call.1} parent=1 // pred_check
      _
    $region3: #{tpu_custom_call.1} parent=1 // pred_check_branch
      %12 = sbr.rel (0) target = $region5
    $region4: #{tpu_custom_call.1} parent=1 // pred_region
      _
    $region5: #{tpu_custom_call.1} parent=1 // pred_fallthru
      _
    // Predicated region
    $region6: #{tpu_custom_call.1} parent=1 // pred_check
      _
    $region7: #{tpu_custom_call.1} parent=1 // pred_check_branch
      %14 = sbr.rel (0) target = $region9
    $region8: #{tpu_custom_call.1} parent=1 // pred_region
      _
    $region9: #{tpu_custom_call.1} parent=1 // pred_fallthru
      _
    // Predicated region
    $region10: #{tpu_custom_call.1} parent=1 // pred_check
      _
    $region11: #{tpu_custom_call.1} parent=1 // pred_check_branch
      %16 = sbr.rel (0) target = $region13
    $region12: #{tpu_custom_call.1} parent=1 // pred_region
      _
    $region13: #{tpu_custom_call.1} parent=1 // pred_fallthru
      _
    // Predicated region
    $region14: #{tpu_custom_call.1} parent=1 // pred_check
      _
    $region15: #{tpu_custom_call.1} parent=1 // pred_check_branch
      %18 = sbr.rel (0) target = $region17
    $region16: #{tpu_custom_call.1} parent=1 // pred_region
      _
    $region17: #{tpu_custom_call.1} parent=1 // pred_fallthru
      _
    // Predicated region
    $region18: #{tpu_custom_call.1} parent=1 // pred_check
      _
    $region19: #{tpu_custom_call.1} parent=1 // pred_check_branch
      %20 = sbr.rel (0) target = $region21
    $region20: #{tpu_custom_call.1} parent=1 // pred_region
      _
    $region21: #{tpu_custom_call.1} parent=1 // pred_fallthru
      _
    %v21 = vld [vmem:[%s1] sm:$0xff]
    %v22 = vld [vmem:[%s1 + $0x8] sm:$0xff]
    %v23 = vld [vmem:[%s3] sm:$0xff]
    %v24 = vld [vmem:[%s3 + $0x8] sm:$0xff]
    %v25 = vld [vmem:[%s3 + $0x10] sm:$0xff]
    %v26 = vld [vmem:[%s3 + $0x18] sm:$0xff]
    %v27 = vld [vmem:[%s2] sm:$0x1]
    %v28 = vld [vmem:[%s4] sm:$0x1]
    %v29 = vld [vmem:[%s0] sm:$0xff]
    %v31 = vperm.slane %v27, 0
    %vm33 = vcmask 130048
    %v35 = vsel %vm33, %v29, 0
    %37 = vmatpush.msra.mxu0 0.0
    %38 = vmatpush.msra.mxu0 0.0
    %39 = vmatpush.msra.mxu0 0.0
    %40 = vmatpush.msra.mxu0 0.0
    %41 = vmatpush.msra.mxu0 0.0
    %42 = vmatpush.msra.mxu0 0.0
    %43 = vmatpush.msra.mxu0 0.0
    %44 = vmatpush.msra.mxu0 0.0
    %45 = vmatpush.msra.mxu0 0.0
    %46 = vmatpush.msra.mxu0 0.0
    %47 = vmatpush.msra.mxu0 0.0
    %48 = vmatpush.msra.mxu0 0.0
    %49 = vmatpush.msra.mxu0 0.0
    %50 = vmatpush.msra.mxu0 0.0
    %51 = vmatpush.msra.mxu0 %v22
    %52 = vmatpush.msra.mxu0 %v21
    %53 = vmatmul.f32.gmra.mxu0 %v35
    %v54 = vpop.f32.mrf.mxu0
    %v55 = vadd.f32 %v31, %v54
    %56 = vdwg.mxu0
    %v57 = vtanh.pop %v55
    %v59 = vperm.slane %v28, 0
    %vm61 = vcmask 261120
    %v63 = vsel %vm61, %v57, 0
    %65 = vmatpush.msra.mxu0 0.0
    %66 = vmatpush.msra.mxu0 0.0
    %67 = vmatpush.msra.mxu0 0.0
    %68 = vmatpush.msra.mxu0 0.0
    %69 = vmatpush.msra.mxu0 0.0
    %70 = vmatpush.msra.mxu0 0.0
    %71 = vmatpush.msra.mxu0 0.0
    %72 = vmatpush.msra.mxu0 0.0
    %73 = vmatpush.msra.mxu0 0.0
    %74 = vmatpush.msra.mxu0 0.0
    %75 = vmatpush.msra.mxu0 0.0
    %76 = vmatpush.msra.mxu0 0.0
    %77 = vmatpush.msra.mxu0 %v26
    %78 = vmatpush.msra.mxu0 %v25
    %79 = vmatpush.msra.mxu0 %v24
    %80 = vmatpush.msra.mxu0 %v23
    %81 = vmatmul.f32.gmra.mxu0 %v63
    %v82 = vpop.f32.mrf.mxu0
    %v83 = vadd.f32 %v59, %v82
    %84 = vdwg.mxu0
    %vm85 = vcmask 64512
    %86 = vst.msk [vmem:[#allocation2] sm:$0xff] %vm85, %v83
    // Predicated region
    $region22: #{tpu_custom_call.1} parent=1 // pred_check
      _
    $region23: #{tpu_custom_call.1} parent=1 // pred_check_branch
      %88 = sbr.rel (0) target = $region25
    $region24: #{tpu_custom_call.1} parent=1 // pred_region
      %90 = vsyncadd [#allocation3], 0
      %s92 = sshll.u32 [#allocation2], 4
      %s93 = int_to_ptr.vmem [resolvable:$true] %s92
      %s94 = sshll.u32 %s5, 4
      %s95 = int_to_ptr.hbm [resolvable:$true] %s94
      %97 = dma.vmem_to_hbm [thread:$0]  %s93, 128, %s95, [#allocation3]
    $region25: #{tpu_custom_call.1} parent=1 // pred_fallthru
      _
    // Predicated region
    $region26: #{tpu_custom_call.1} parent=1 // pred_check
      _
    $region27: #{tpu_custom_call.1} parent=1 // pred_check_branch
      %99 = sbr.rel (0) target = $region29
    $region28: #{tpu_custom_call.1} parent=1 // pred_region
      %101 = dma.done [#allocation3], 128
    $region29: #{tpu_custom_call.1} parent=1 // pred_fallthru
      _
    %102 = vsyncpa [#allocation3], 1

</llo_original>
